<compile_context>
chip_gen: v5e
topology: v5e:2x2
jax: 0.10.0
libtpu: 0.0.40
codegen_flags: <defaults>
</compile_context>

<pallas_src>
import numpy as np
import jax
import jax.numpy as jnp
from jax.experimental import pallas as pl
from jax.experimental.pallas import tpu as pltpu

KW = 6        # conv kernel width  (kernel_size=(1, 6))
STRIDE = 2    # conv stride along W (stride=(1, 2))


def _conv_out_len(in_len):
    return (in_len - KW) // STRIDE + 1


def _round_up(x, m):
    return ((x + m - 1) // m) * m


def _toeplitz(w, in_len):
    """Strided-Toeplitz matrix so that  x @ M  == conv1d(x, w, stride=2)."""
    out_len = _conv_out_len(in_len)
    M = jnp.zeros((in_len, out_len), jnp.float32)
    for j in range(out_len):
        M = M.at[STRIDE * j:STRIDE * j + KW, j].set(w)
    return M


# --------------------------------------------------------------------------- #
# Kernel: one (TILE_B, H*W) slab of samples -> (TILE_B, A) Q-values.
# Everything is 2D matmuls (MXU) + elementwise ops (VPU); no reshapes/slices.
# --------------------------------------------------------------------------- #
def dqn_kernel(x_ref, m1_ref, m2e_ref, m2o_ref, wlin_ref, blin_ref,
               b1_ref, b2_ref, o_ref):
    cd = x_ref.dtype                                      # matmul operand dtype
    x = x_ref[...]                                        # (TB, He*W)

    # Conv1 (all He rows at once, block-diagonal Toeplitz) + bias + ReLU.
    h1 = jnp.dot(x, m1_ref[...], preferred_element_type=jnp.float32) + b1_ref[0]
    h1 = jnp.maximum(h1, 0.0).astype(cd)                  # (TB, He*W1)

    # Conv2, split into even / odd image rows + bias + ReLU.
    h2e = jnp.dot(h1, m2e_ref[...], preferred_element_type=jnp.float32) + b2_ref[0]
    h2o = jnp.dot(h1, m2o_ref[...], preferred_element_type=jnp.float32) + b2_ref[0]
    h2e = jnp.maximum(h2e, 0.0)
    h2o = jnp.maximum(h2o, 0.0)

    # MaxPool2d((2,1)) + Flatten  ==  elementwise max of the two slabs; column
    # order is already (pool_row, w), matching PyTorch's Flatten / lin_w layout.
    pooled = jnp.maximum(h2e, h2o).astype(cd)             # (TB, F)

    # Linear + ReLU, lane-contiguous (TILE_B, A) store.
    out = jnp.dot(pooled, wlin_ref[...], preferred_element_type=jnp.float32)
    out = out + blin_ref[...]
    o_ref[...] = jnp.maximum(out, 0.0).astype(o_ref.dtype)


# --------------------------------------------------------------------------- #
# Wrapper: parameter preparation (one-time glue) + pallas_call.
# --------------------------------------------------------------------------- #
def prepare_dqn_params(params, H, W, compute_dtype=jnp.float32):
    w1, b1, w2, b2, lin_w, lin_b = params
    w1 = jnp.asarray(w1, jnp.float32).reshape(-1)
    w2 = jnp.asarray(w2, jnp.float32).reshape(-1)

    He = H - (H % 2)              # MaxPool2d((2,1)) floor: last row unused if H odd
    W1 = _conv_out_len(W)
    W2 = _conv_out_len(W1)
    Hp = He // 2
    F = Hp * W2
    A = lin_w.shape[0]
    assert lin_w.shape == (A, F)

    T1 = _toeplitz(w1, W)                                   # (W,  W1)
    T2 = _toeplitz(w2, W1)                                  # (W1, W2)

    # Conv1 for all He rows at once: block-diagonal (He*W, He*W1).
    M1 = jnp.kron(jnp.eye(He, dtype=jnp.float32), T1)

    # Conv2 split by even / odd image rows so MaxPool+Flatten is one max.
    # Output column j = p*W2 + w reads h1 columns of image row 2p (even) / 2p+1 (odd).
    M2e = jnp.zeros((He * W1, F), jnp.float32)
    M2o = jnp.zeros((He * W1, F), jnp.float32)
    for p in range(Hp):
        M2e = M2e.at[(2 * p) * W1:(2 * p + 1) * W1, p * W2:(p + 1) * W2].set(T2)
        M2o = M2o.at[(2 * p + 1) * W1:(2 * p + 2) * W1, p * W2:(p + 1) * W2].set(T2)

    return dict(
        m1=M1.astype(compute_dtype),
        m2e=M2e.astype(compute_dtype),
        m2o=M2o.astype(compute_dtype),
        wlin=jnp.asarray(lin_w, jnp.float32).T.astype(compute_dtype),  # (F, A)
        blin=jnp.asarray(lin_b, jnp.float32).reshape(1, A),
        b1=jnp.asarray(b1, jnp.float32).reshape(1),
        b2=jnp.asarray(b2, jnp.float32).reshape(1),
        dims=(He, W1, W2, Hp, F, A),
    )


def dqn_forward_pallas(x_nchw, params, *, tile_b=512, compute_dtype=jnp.float32):
    """x_nchw: (N, 1, H, W) float32.  Returns (N, a_num) float32."""
    N, C, H, W = x_nchw.shape
    assert C == 1
    pp = prepare_dqn_params(params, H, W, compute_dtype)
    He, W1, W2, Hp, F, A = pp["dims"]
    D_in = He * W
    D_h1 = He * W1

    # (N,1,H,W) -> (N, He*W).  Dropping an odd trailing row before the (row-
    # independent) convs matches MaxPool2d's floor behaviour exactly.
    x2d = x_nchw[:, 0, :He, :].reshape(N, D_in).astype(compute_dtype)

    # Batch tiling: tile_b samples per grid step (multiple of 8 for sublane tiling).
    tile_b = max(8, min(_round_up(tile_b, 8), _round_up(N, 8)))
    B_pad = _round_up(N, tile_b)
    if B_pad != N:
        x2d = jnp.pad(x2d, ((0, B_pad - N), (0, 0)))
    n_tiles = B_pad // tile_b

    out = pl.pallas_call(
        dqn_kernel,
        out_shape=jax.ShapeDtypeStruct((B_pad, A), jnp.float32),
        grid=(n_tiles,),
        in_specs=[
            pl.BlockSpec((tile_b, D_in), lambda i: (i, 0)),          # x tile
            pl.BlockSpec((D_in, D_h1), lambda i: (0, 0)),            # conv1 (block-diag Toeplitz)
            pl.BlockSpec((D_h1, F), lambda i: (0, 0)),               # conv2, even image rows
            pl.BlockSpec((D_h1, F), lambda i: (0, 0)),               # conv2, odd image rows
            pl.BlockSpec((F, A), lambda i: (0, 0)),                  # linear weight (F, A)
            pl.BlockSpec((1, A), lambda i: (0, 0)),                  # linear bias
            pl.BlockSpec(memory_space=pltpu.MemorySpace.SMEM),       # conv1 bias (scalar)
            pl.BlockSpec(memory_space=pltpu.MemorySpace.SMEM),       # conv2 bias (scalar)
        ],
        out_specs=pl.BlockSpec((tile_b, A), lambda i: (i, 0)),
        compiler_params=pltpu.CompilerParams(
            dimension_semantics=("parallel",)),                      # shard batch tiles on v7x cores
    )(x2d, pp["m1"], pp["m2e"], pp["m2o"], pp["wlin"], pp["blin"],
      pp["b1"], pp["b2"])

    return out[:N]


# --------------------------------------------------------------------------- #
# Pure-JAX reference mirroring the PyTorch forward exactly.
# --------------------------------------------------------------------------- #
def dqn_forward_ref(x_nchw, params):
    w1, b1, w2, b2, lin_w, lin_b = params
    x = x_nchw[:, 0, :, :].astype(jnp.float32)
    N, H, W = x.shape
    W1 = _conv_out_len(W)
    h1 = jnp.stack(
        [(x[:, :, STRIDE * j:STRIDE * j + KW] * w1).sum(-1) for j in range(W1)],
        axis=-1) + b1[0]
    h1 = jnp.maximum(h1, 0.0)
    W2 = _conv_out_len(W1)
    h2 = jnp.stack(
        [(h1[:, :, STRIDE * j:STRIDE * j + KW] * w2).sum(-1) for j in range(W2)],
        axis=-1) + b2[0]
    h2 = jnp.maximum(h2, 0.0)
    Hp = H // 2
    pooled = jnp.maximum(h2[:, 0:2 * Hp:2, :], h2[:, 1:2 * Hp:2, :])   # (N, Hp, W2)
    flat = pooled.reshape(N, Hp * W2)
    lin = jnp.einsum("nf,af->na", flat, lin_w,
                     precision=jax.lax.Precision.HIGHEST) + lin_b
    return jnp.maximum(lin, 0.0)


if __name__ == "__main__":
    # Shapes consistent with the module:
    #   s_dim = (7, 30) -> input (N, 1, s_dim[0]+1, s_dim[1]) = (N, 1, 8, 30); a_num = 4.
    s_dim = (7, 30)
    a_num = 4
    H = s_dim[0] + 1          # 8
    W = s_dim[1]              # 30
    W1 = _conv_out_len(W)     # 13
    W2 = _conv_out_len(W1)    # 4
    Hp = H // 2               # 4
    F = Hp * W2               # 16  (== in_features computed in __init__)

    key = jax.random.PRNGKey(0)
    kw1, kb1, kw2, kb2, klw, klb, kx1, kx2 = jax.random.split(key, 8)
    w1 = jax.random.normal(kw1, (KW,), jnp.float32) * 0.5
    b1 = jax.random.normal(kb1, (1,), jnp.float32) * 0.1
    w2 = jax.random.normal(kw2, (KW,), jnp.float32) * 0.5
    b2 = jax.random.normal(kb2, (1,), jnp.float32) * 0.1
    lin_w = jax.random.normal(klw, (a_num, F), jnp.float32) * 0.3
    lin_b = jax.random.normal(klb, (a_num,), jnp.float32) * 0.1
    params = (w1, b1, w2, b2, lin_w, lin_b)

    # 1) Small batch (single padded tile).
    x_small = jax.random.normal(kx1, (2, 1, H, W), jnp.float32)
    out_small = jax.block_until_ready(dqn_forward_pallas(x_small, params))
    ref_small = jax.block_until_ready(dqn_forward_ref(x_small, params))
    assert out_small.shape == (2, a_num)
    np.testing.assert_allclose(np.asarray(out_small), np.asarray(ref_small),
                               rtol=1e-3, atol=1e-3)

    # 2) Larger, uneven batch: multiple grid steps + padding of the final tile.
    x_big = jax.random.normal(kx2, (1037, 1, H, W), jnp.float32)
    out_big = jax.block_until_ready(dqn_forward_pallas(x_big, params, tile_b=256))
    ref_big = jax.block_until_ready(dqn_forward_ref(x_big, params))
    assert out_big.shape == (1037, a_num)
    np.testing.assert_allclose(np.asarray(out_big), np.asarray(ref_big),
                               rtol=1e-3, atol=1e-3)

    # 3) bf16 matmul operands (v6e/v7x HBM-traffic optimization), f32 accumulate.
    out_bf16 = jax.block_until_ready(
        dqn_forward_pallas(x_big, params, tile_b=256, compute_dtype=jnp.bfloat16))
    rel_err = float(np.max(np.abs(np.asarray(out_bf16) - np.asarray(ref_big)))
                    / (np.max(np.abs(np.asarray(ref_big))) + 1e-6))
    assert rel_err < 5e-2, f"bf16 path error too large: {rel_err}"

    print("KERNEL_OK")
</pallas_src>

<mosaic_0001>
module attributes {stable_mosaic.version = 11 : i64} {
  func.func @dqn_kernel(%arg0: i32, %arg1: memref<8x240xf32, #tpu.memory_space<vmem>>, %arg2: memref<240x104xf32, #tpu.memory_space<vmem>>, %arg3: memref<104x16xf32, #tpu.memory_space<vmem>>, %arg4: memref<104x16xf32, #tpu.memory_space<vmem>>, %arg5: memref<16x4xf32, #tpu.memory_space<vmem>>, %arg6: memref<1x4xf32, #tpu.memory_space<vmem>>, %arg7: memref<1xf32, #tpu.memory_space<smem>>, %arg8: memref<1xf32, #tpu.memory_space<smem>>, %arg9: memref<8x4xf32, #tpu.memory_space<vmem>>) attributes {dimension_semantics = [#tpu.dimension_semantics<parallel>], iteration_bounds = array<i64: 1>, scalar_prefetch = 0 : i64, scratch_operands = 0 : i64, tpu.core_type = #tpu.core_type<tc>, window_params = [{transform_indices = @transform_0, window_bounds = array<i64: 8, 240>}, {pipeline_mode = #tpu.pipeline_mode<synchronous>, transform_indices = @transform_1, window_bounds = array<i64: 240, 104>}, {pipeline_mode = #tpu.pipeline_mode<synchronous>, transform_indices = @transform_2, window_bounds = array<i64: 104, 16>}, {pipeline_mode = #tpu.pipeline_mode<synchronous>, transform_indices = @transform_3, window_bounds = array<i64: 104, 16>}, {pipeline_mode = #tpu.pipeline_mode<synchronous>, transform_indices = @transform_4, window_bounds = array<i64: 16, 4>}, {pipeline_mode = #tpu.pipeline_mode<synchronous>, transform_indices = @transform_5, window_bounds = array<i64: 1, 4>}, {transform_indices = @transform_6, window_bounds = array<i64: 1>}, {transform_indices = @transform_7, window_bounds = array<i64: 1>}, {transform_indices = @transform_8, window_bounds = array<i64: 8, 4>}]} {
    %c0 = arith.constant 0 : index
    %c0_0 = arith.constant 0 : index
    %0 = vector.load %arg1[%c0, %c0_0] : memref<8x240xf32, #tpu.memory_space<vmem>>, vector<8x240xf32>
    %c0_1 = arith.constant 0 : index
    %c0_2 = arith.constant 0 : index
    %1 = vector.load %arg2[%c0_1, %c0_2] : memref<240x104xf32, #tpu.memory_space<vmem>>, vector<240x104xf32>
    %cst = arith.constant dense<0.000000e+00> : vector<8x104xf32>
    %2 = tpu.matmul %0, %1, %cst {dimension_numbers = #tpu.dot_dimension_numbers<[1], [0], [0], [1], [0, 0, 1, 1], [], []>} : vector<8x240xf32>, vector<240x104xf32>, vector<8x104xf32> -> vector<8x104xf32>
    %c0_3 = arith.constant 0 : index
    %3 = memref.load %arg7[%c0_3] : memref<1xf32, #tpu.memory_space<smem>>
    %4 = vector.broadcast %3 : f32 to vector<8x104xf32>
    %5 = arith.addf %2, %4 : vector<8x104xf32>
    %cst_4 = arith.constant 0.000000e+00 : f32
    %6 = vector.broadcast %cst_4 : f32 to vector<8x104xf32>
    %7 = arith.maximumf %5, %6 : vector<8x104xf32>
    %c0_5 = arith.constant 0 : index
    %c0_6 = arith.constant 0 : index
    %8 = vector.load %arg3[%c0_5, %c0_6] : memref<104x16xf32, #tpu.memory_space<vmem>>, vector<104x16xf32>
    %cst_7 = arith.constant dense<0.000000e+00> : vector<8x16xf32>
    %9 = tpu.matmul %7, %8, %cst_7 {dimension_numbers = #tpu.dot_dimension_numbers<[1], [0], [0], [1], [0, 0, 1, 1], [], []>} : vector<8x104xf32>, vector<104x16xf32>, vector<8x16xf32> -> vector<8x16xf32>
    %c0_8 = arith.constant 0 : index
    %10 = memref.load %arg8[%c0_8] : memref<1xf32, #tpu.memory_space<smem>>
    %11 = vector.broadcast %10 : f32 to vector<8x16xf32>
    %12 = arith.addf %9, %11 : vector<8x16xf32>
    %c0_9 = arith.constant 0 : index
    %c0_10 = arith.constant 0 : index
    %13 = vector.load %arg4[%c0_9, %c0_10] : memref<104x16xf32, #tpu.memory_space<vmem>>, vector<104x16xf32>
    %cst_11 = arith.constant dense<0.000000e+00> : vector<8x16xf32>
    %14 = tpu.matmul %7, %13, %cst_11 {dimension_numbers = #tpu.dot_dimension_numbers<[1], [0], [0], [1], [0, 0, 1, 1], [], []>} : vector<8x104xf32>, vector<104x16xf32>, vector<8x16xf32> -> vector<8x16xf32>
    %c0_12 = arith.constant 0 : index
    %15 = memref.load %arg8[%c0_12] : memref<1xf32, #tpu.memory_space<smem>>
    %16 = vector.broadcast %15 : f32 to vector<8x16xf32>
    %17 = arith.addf %14, %16 : vector<8x16xf32>
    %cst_13 = arith.constant 0.000000e+00 : f32
    %18 = vector.broadcast %cst_13 : f32 to vector<8x16xf32>
    %19 = arith.maximumf %12, %18 : vector<8x16xf32>
    %cst_14 = arith.constant 0.000000e+00 : f32
    %20 = vector.broadcast %cst_14 : f32 to vector<8x16xf32>
    %21 = arith.maximumf %17, %20 : vector<8x16xf32>
    %22 = arith.maximumf %19, %21 : vector<8x16xf32>
    %c0_15 = arith.constant 0 : index
    %c0_16 = arith.constant 0 : index
    %23 = vector.load %arg5[%c0_15, %c0_16] : memref<16x4xf32, #tpu.memory_space<vmem>>, vector<16x4xf32>
    %cst_17 = arith.constant dense<0.000000e+00> : vector<8x4xf32>
    %24 = tpu.matmul %22, %23, %cst_17 {dimension_numbers = #tpu.dot_dimension_numbers<[1], [0], [0], [1], [0, 0, 1, 1], [], []>} : vector<8x16xf32>, vector<16x4xf32>, vector<8x4xf32> -> vector<8x4xf32>
    %c0_18 = arith.constant 0 : index
    %c0_19 = arith.constant 0 : index
    %25 = vector.load %arg6[%c0_18, %c0_19] : memref<1x4xf32, #tpu.memory_space<vmem>>, vector<1x4xf32>
    %26 = vector.broadcast %25 : vector<1x4xf32> to vector<8x4xf32>
    %27 = arith.addf %24, %26 : vector<8x4xf32>
    %cst_20 = arith.constant 0.000000e+00 : f32
    %28 = vector.broadcast %cst_20 : f32 to vector<8x4xf32>
    %29 = arith.maximumf %27, %28 : vector<8x4xf32>
    %c0_21 = arith.constant 0 : index
    %c0_22 = arith.constant 0 : index
    %30 = vector.load %arg9[%c0_21, %c0_22] : memref<8x4xf32, #tpu.memory_space<vmem>>, vector<8x4xf32>
    tpu.vector_store %arg9[%c0_21, %c0_22], %29 {strides = array<i32>} : memref<8x4xf32, #tpu.memory_space<vmem>>, vector<8x4xf32>,
    return
  }
  func.func @transform_0(%arg0: i32) -> (i32, i32) {
    %c0_i32 = arith.constant 0 : i32
    %c0_i32_0 = arith.constant 0 : i32
    return %arg0, %c0_i32 : i32, i32
  }
  func.func @transform_1(%arg0: i32) -> (i32, i32) {
    %c0_i32 = arith.constant 0 : i32
    %c0_i32_0 = arith.constant 0 : i32
    %c0_i32_1 = arith.constant 0 : i32
    return %c0_i32, %c0_i32_0 : i32, i32
  }
  func.func @transform_2(%arg0: i32) -> (i32, i32) {
    %c0_i32 = arith.constant 0 : i32
    %c0_i32_0 = arith.constant 0 : i32
    %c0_i32_1 = arith.constant 0 : i32
    return %c0_i32, %c0_i32_0 : i32, i32
  }
  func.func @transform_3(%arg0: i32) -> (i32, i32) {
    %c0_i32 = arith.constant 0 : i32
    %c0_i32_0 = arith.constant 0 : i32
    %c0_i32_1 = arith.constant 0 : i32
    return %c0_i32, %c0_i32_0 : i32, i32
  }
  func.func @transform_4(%arg0: i32) -> (i32, i32) {
    %c0_i32 = arith.constant 0 : i32
    %c0_i32_0 = arith.constant 0 : i32
    %c0_i32_1 = arith.constant 0 : i32
    return %c0_i32, %c0_i32_0 : i32, i32
  }
  func.func @transform_5(%arg0: i32) -> (i32, i32) {
    %c0_i32 = arith.constant 0 : i32
    %c0_i32_0 = arith.constant 0 : i32
    %c0_i32_1 = arith.constant 0 : i32
    return %c0_i32, %c0_i32_0 : i32, i32
  }
  func.func @transform_6(%arg0: i32) -> i32 {
    %c0_i32 = arith.constant 0 : i32
    %c0_i32_0 = arith.constant 0 : i32
    return %c0_i32 : i32
  }
  func.func @transform_7(%arg0: i32) -> i32 {
    %c0_i32 = arith.constant 0 : i32
    %c0_i32_0 = arith.constant 0 : i32
    return %c0_i32 : i32
  }
  func.func @transform_8(%arg0: i32) -> (i32, i32) {
    %c0_i32 = arith.constant 0 : i32
    %c0_i32_0 = arith.constant 0 : i32
    return %arg0, %c0_i32 : i32, i32
  }
}

</mosaic_0001>

<llo_original>
// kernel: tpu_custom_call.1
$region0: #{tpu_custom_call.1}
  #allocation0 [shape = 'u32[]', space=smem, size = 0x4, offset = 0x4, fixed_abs, tag = 'smem constant byte address 0x4 - core index']
  #allocation1 [shape = 'u32[72,128]{1,0:T(1,128)}', space=vmem, size = 0x9000, scoped, tag = 'internal scratch']
  #allocation2 [shape = 'f32[1]{0:T(128)S(6)}', space=smem, size = 0x200, scoped, tag = 'scoped memory for tpu_custom_call.1']
  #allocation3 [shape = 'f32[1]{0:T(128)S(6)}', space=smem, size = 0x200, scoped, tag = 'scoped memory for tpu_custom_call.1']
  %s0 = inlined_call_operand.vmem [shape: f32[8,240], index: 0, kind: input, shape index: {}]
  %s1 = inlined_call_operand.vmem [shape: f32[240,104], index: 1, kind: input, shape index: {}]
  %s2 = inlined_call_operand.vmem [shape: f32[104,16], index: 2, kind: input, shape index: {}]
  %s3 = inlined_call_operand.vmem [shape: f32[104,16], index: 3, kind: input, shape index: {}]
  %s4 = inlined_call_operand.vmem [shape: f32[16,4], index: 4, kind: input, shape index: {}]
  %s5 = inlined_call_operand.vmem [shape: f32[1,4], index: 5, kind: input, shape index: {}]
  %s6 = inlined_call_operand.<no memory space> [shape: f32[1], index: 6, kind: input, shape index: {}]
  %s7 = inlined_call_operand.<no memory space> [shape: f32[1], index: 7, kind: input, shape index: {}]
  %s8 = inlined_call_operand.vmem [shape: f32[8,4], index: 8, kind: output, shape index: {}]
  %s9 = sld [smem:[#allocation0]]
  $region42: #{tpu_custom_call.1} parent=0
    _
  %s11 = ssub.s32 1, %s9
  %s12 = scalar_select 0, %s11, %s9
  %13 = sst [smem:[#allocation2]] %s6
  %14 = sst [smem:[#allocation3]] %s7
  // Predicated region
  $region2: #{tpu_custom_call.1} parent=0 // pred_check
    _
  $region3: #{tpu_custom_call.1} parent=0 // pred_check_branch
    %16 = sbr.rel (0) target = $region5
  $region4: #{tpu_custom_call.1} parent=0 // pred_region
    _
  $region5: #{tpu_custom_call.1} parent=0 // pred_fallthru
    _
  // Predicated region
  $region6: #{tpu_custom_call.1} parent=0 // pred_check
    _
  $region7: #{tpu_custom_call.1} parent=0 // pred_check_branch
    %18 = sbr.rel (0) target = $region9
  $region8: #{tpu_custom_call.1} parent=0 // pred_region
    _
  $region9: #{tpu_custom_call.1} parent=0 // pred_fallthru
    _
  // Predicated region
  $region10: #{tpu_custom_call.1} parent=0 // pred_check
    _
  $region11: #{tpu_custom_call.1} parent=0 // pred_check_branch
    %20 = sbr.rel (0) target = $region13
  $region12: #{tpu_custom_call.1} parent=0 // pred_region
    _
  $region13: #{tpu_custom_call.1} parent=0 // pred_fallthru
    _
  // Predicated region
  $region14: #{tpu_custom_call.1} parent=0 // pred_check
    _
  $region15: #{tpu_custom_call.1} parent=0 // pred_check_branch
    %22 = sbr.rel (0) target = $region17
  $region16: #{tpu_custom_call.1} parent=0 // pred_region
    _
  $region17: #{tpu_custom_call.1} parent=0 // pred_fallthru
    _
  // Predicated region
  $region18: #{tpu_custom_call.1} parent=0 // pred_check
    _
  $region19: #{tpu_custom_call.1} parent=0 // pred_check_branch
    %24 = sbr.rel (0) target = $region21
  $region20: #{tpu_custom_call.1} parent=0 // pred_region
    _
  $region21: #{tpu_custom_call.1} parent=0 // pred_fallthru
    _
  // Predicated region
  $region22: #{tpu_custom_call.1} parent=0 // pred_check
    _
  $region23: #{tpu_custom_call.1} parent=0 // pred_check_branch
    %26 = sbr.rel (0) target = $region25
  $region24: #{tpu_custom_call.1} parent=0 // pred_region
    _
  $region25: #{tpu_custom_call.1} parent=0 // pred_fallthru
    _
  // Predicated region
  $region26: #{tpu_custom_call.1} parent=0 // pred_check
    _
  $region27: #{tpu_custom_call.1} parent=0 // pred_check_branch
    %28 = sbr.rel (0) target = $region29
  $region28: #{tpu_custom_call.1} parent=0 // pred_region
    _
  $region29: #{tpu_custom_call.1} parent=0 // pred_fallthru
    _
  // Predicated region
  $region30: #{tpu_custom_call.1} parent=0 // pred_check
    _
  $region31: #{tpu_custom_call.1} parent=0 // pred_check_branch
    %30 = sbr.rel (0) target = $region33
  $region32: #{tpu_custom_call.1} parent=0 // pred_region
    _
  $region33: #{tpu_custom_call.1} parent=0 // pred_fallthru
    _
  %v31 = vld [vmem:[%s0] sm:$0xff]
  %v32 = vld [vmem:[%s0 + $0x8] sm:$0xff]
  %v33 = vld [vmem:[%s1] sm:$0xff]
  %v34 = vld [vmem:[%s1 + $0x8] sm:$0xff]
  %v35 = vld [vmem:[%s1 + $0x10] sm:$0xff]
  %v36 = vld [vmem:[%s1 + $0x18] sm:$0xff]
  %v37 = vld [vmem:[%s1 + $0x20] sm:$0xff]
  %v38 = vld [vmem:[%s1 + $0x28] sm:$0xff]
  %v39 = vld [vmem:[%s1 + $0x30] sm:$0xff]
  %v40 = vld [vmem:[%s1 + $0x38] sm:$0xff]
  %v41 = vld [vmem:[%s1 + $0x40] sm:$0xff]
  %v42 = vld [vmem:[%s1 + $0x48] sm:$0xff]
  %v43 = vld [vmem:[%s1 + $0x50] sm:$0xff]
  %v44 = vld [vmem:[%s1 + $0x58] sm:$0xff]
  %v45 = vld [vmem:[%s1 + $0x60] sm:$0xff]
  %v46 = vld [vmem:[%s1 + $0x68] sm:$0xff]
  %v47 = vld [vmem:[%s1 + $0x70] sm:$0xff]
  %v48 = vld [vmem:[%s1 + $0x78] sm:$0xff]
  %v49 = vld [vmem:[%s1 + $0x80] sm:$0xff]
  %v50 = vld [vmem:[%s1 + $0x88] sm:$0xff]
  %v51 = vld [vmem:[%s1 + $0x90] sm:$0xff]
  %v52 = vld [vmem:[%s1 + $0x98] sm:$0xff]
  %v53 = vld [vmem:[%s1 + $0xa0] sm:$0xff]
  %v54 = vld [vmem:[%s1 + $0xa8] sm:$0xff]
  %v55 = vld [vmem:[%s1 + $0xb0] sm:$0xff]
  %v56 = vld [vmem:[%s1 + $0xb8] sm:$0xff]
  %v57 = vld [vmem:[%s1 + $0xc0] sm:$0xff]
  %v58 = vld [vmem:[%s1 + $0xc8] sm:$0xff]
  %v59 = vld [vmem:[%s1 + $0xd0] sm:$0xff]
  %v60 = vld [vmem:[%s1 + $0xd8] sm:$0xff]
  %v61 = vld [vmem:[%s1 + $0xe0] sm:$0xff]
  %v62 = vld [vmem:[%s1 + $0xe8] sm:$0xff]
  %s63 = sld [smem:[#allocation2]]
  %v64 = vstv %s63
  %vm65 = vcmask 916480
  %v67 = vsel %vm65, %v32, 0
  %69 = vmatpush.msra.mxu0 %v48
  %70 = vmatpush.msra.mxu0 %v47
  %71 = vmatpush.msra.mxu0 %v46
  %72 = vmatpush.msra.mxu0 %v45
  %73 = vmatpush.msra.mxu0 %v44
  %74 = vmatpush.msra.mxu0 %v43
  %75 = vmatpush.msra.mxu0 %v42
  %76 = vmatpush.msra.mxu0 %v41
  %77 = vmatpush.msra.mxu0 %v40
  %78 = vmatpush.msra.mxu0 %v39
  %79 = vmatpush.msra.mxu0 %v38
  %80 = vmatpush.msra.mxu0 %v37
  %81 = vmatpush.msra.mxu0 %v36
  %82 = vmatpush.msra.mxu0 %v35
  %83 = vmatpush.msra.mxu0 %v34
  %84 = vmatpush.msra.mxu0 %v33
  %85 = vmatmul.f32.gmra.mxu0 %v31
  %v86 = vpop.f32.mrf.mxu0
  %v87 = vadd.f32 %v64, %v86
  %88 = vdwg.mxu0
  %89 = vmatpush.msra.mxu0 0.0
  %90 = vmatpush.msra.mxu0 0.0
  %91 = vmatpush.msra.mxu0 %v62
  %92 = vmatpush.msra.mxu0 %v61
  %93 = vmatpush.msra.mxu0 %v60
  %94 = vmatpush.msra.mxu0 %v59
  %95 = vmatpush.msra.mxu0 %v58
  %96 = vmatpush.msra.mxu0 %v57
  %97 = vmatpush.msra.mxu0 %v56
  %98 = vmatpush.msra.mxu0 %v55
  %99 = vmatpush.msra.mxu0 %v54
  %100 = vmatpush.msra.mxu0 %v53
  %101 = vmatpush.msra.mxu0 %v52
  %102 = vmatpush.msra.mxu0 %v51
  %103 = vmatpush.msra.mxu0 %v50
  %104 = vmatpush.msra.mxu0 %v49
  %105 = vmatmul.f32.gmra.mxu0 %v67
  %v106 = vpop.f32.mrf.mxu0
  %v107 = vadd.f32 %v87, %v106
  %108 = vdwg.mxu0
  %v109 = vmax.f32 %v107, 0.0
  %v110 = vld [vmem:[%s2] sm:$0xff]
  %v111 = vld [vmem:[%s2 + $0x8] sm:$0xff]
  %v112 = vld [vmem:[%s2 + $0x10] sm:$0xff]
  %v113 = vld [vmem:[%s2 + $0x18] sm:$0xff]
  %v114 = vld [vmem:[%s2 + $0x20] sm:$0xff]
  %v115 = vld [vmem:[%s2 + $0x28] sm:$0xff]
  %v116 = vld [vmem:[%s2 + $0x30] sm:$0xff]
  %v117 = vld [vmem:[%s2 + $0x38] sm:$0xff]
  %v118 = vld [vmem:[%s2 + $0x40] sm:$0xff]
  %v119 = vld [vmem:[%s2 + $0x48] sm:$0xff]
  %v120 = vld [vmem:[%s2 + $0x50] sm:$0xff]
  %v121 = vld [vmem:[%s2 + $0x58] sm:$0xff]
  %v122 = vld [vmem:[%s2 + $0x60] sm:$0xff]
  %s123 = sld [smem:[#allocation3]]
  %v124 = vstv %s123
  %vm125 = vcmask 850944
  %v127 = vsel %vm125, %v109, 0
  %129 = vmatpush.msra.mxu0 0.0
  %130 = vmatpush.msra.mxu0 0.0
  %131 = vmatpush.msra.mxu0 0.0
  %132 = vmatpush.msra.mxu0 %v122
  %133 = vmatpush.msra.mxu0 %v121
  %134 = vmatpush.msra.mxu0 %v120
  %135 = vmatpush.msra.mxu0 %v119
  %136 = vmatpush.msra.mxu0 %v118
  %137 = vmatpush.msra.mxu0 %v117
  %138 = vmatpush.msra.mxu0 %v116
  %139 = vmatpush.msra.mxu0 %v115
  %140 = vmatpush.msra.mxu0 %v114
  %141 = vmatpush.msra.mxu0 %v113
  %142 = vmatpush.msra.mxu0 %v112
  %143 = vmatpush.msra.mxu0 %v111
  %144 = vmatpush.msra.mxu0 %v110
  %145 = vmatmul.f32.gmra.mxu0 %v127
  %v146 = vpop.f32.mrf.mxu0
  %v147 = vadd.f32 %v124, %v146
  %148 = vdwg.mxu0
  %v149 = vld [vmem:[%s3] sm:$0xff]
  %v150 = vld [vmem:[%s3 + $0x8] sm:$0xff]
  %v151 = vld [vmem:[%s3 + $0x10] sm:$0xff]
  %v152 = vld [vmem:[%s3 + $0x18] sm:$0xff]
  %v153 = vld [vmem:[%s3 + $0x20] sm:$0xff]
  %v154 = vld [vmem:[%s3 + $0x28] sm:$0xff]
  %v155 = vld [vmem:[%s3 + $0x30] sm:$0xff]
  %v156 = vld [vmem:[%s3 + $0x38] sm:$0xff]
  %v157 = vld [vmem:[%s3 + $0x40] sm:$0xff]
  %v158 = vld [vmem:[%s3 + $0x48] sm:$0xff]
  %v159 = vld [vmem:[%s3 + $0x50] sm:$0xff]
  %v160 = vld [vmem:[%s3 + $0x58] sm:$0xff]
  %v161 = vld [vmem:[%s3 + $0x60] sm:$0xff]
  %162 = vmatpush.msra.mxu0 0.0
  %163 = vmatpush.msra.mxu0 0.0
  %164 = vmatpush.msra.mxu0 0.0
  %165 = vmatpush.msra.mxu0 %v161
  %166 = vmatpush.msra.mxu0 %v160
  %167 = vmatpush.msra.mxu0 %v159
  %168 = vmatpush.msra.mxu0 %v158
  %169 = vmatpush.msra.mxu0 %v157
  %170 = vmatpush.msra.mxu0 %v156
  %171 = vmatpush.msra.mxu0 %v155
  %172 = vmatpush.msra.mxu0 %v154
  %173 = vmatpush.msra.mxu0 %v153
  %174 = vmatpush.msra.mxu0 %v152
  %175 = vmatpush.msra.mxu0 %v151
  %176 = vmatpush.msra.mxu0 %v150
  %177 = vmatpush.msra.mxu0 %v149
  %178 = vmatmul.f32.gmra.mxu0 %v127
  %v179 = vpop.f32.mrf.mxu0
  %v180 = vadd.f32 %v124, %v179
  %181 = vdwg.mxu0
  %v182 = vmax.f32 %v147, 0.0
  %v183 = vmax.f32 %v180, 0.0
  %v184 = vmax.f32 %v182, %v183
  %v185 = vld [vmem:[%s4] sm:$0xff]
  %v186 = vld [vmem:[%s4 + $0x8] sm:$0xff]
  %v187 = vld [vmem:[%s5] sm:$0x1]
  %v189 = vperm.slane %v187, 0
  %vm191 = vcmask 130048
  %v193 = vsel %vm191, %v184, 0
  %195 = vmatpush.msra.mxu0 0.0
  %196 = vmatpush.msra.mxu0 0.0
  %197 = vmatpush.msra.mxu0 0.0
  %198 = vmatpush.msra.mxu0 0.0
  %199 = vmatpush.msra.mxu0 0.0
  %200 = vmatpush.msra.mxu0 0.0
  %201 = vmatpush.msra.mxu0 0.0
  %202 = vmatpush.msra.mxu0 0.0
  %203 = vmatpush.msra.mxu0 0.0
  %204 = vmatpush.msra.mxu0 0.0
  %205 = vmatpush.msra.mxu0 0.0
  %206 = vmatpush.msra.mxu0 0.0
  %207 = vmatpush.msra.mxu0 0.0
  %208 = vmatpush.msra.mxu0 0.0
  %209 = vmatpush.msra.mxu0 %v186
  %210 = vmatpush.msra.mxu0 %v185
  %211 = vmatmul.f32.gmra.mxu0 %v193
  %v212 = vpop.f32.mrf.mxu0
  %v213 = vadd.f32 %v189, %v212
  %214 = vdwg.mxu0
  %v215 = vmax.f32 %v213, 0.0
  %vm216 = vcmask 31744
  %217 = vst.msk [vmem:[%s8] sm:$0xff] %vm216, %v215
  // Predicated region
  $region34: #{tpu_custom_call.1} parent=0 // pred_check
    _
  $region35: #{tpu_custom_call.1} parent=0 // pred_check_branch
    %219 = sbr.rel (0) target = $region37
  $region36: #{tpu_custom_call.1} parent=0 // pred_region
    _
  $region37: #{tpu_custom_call.1} parent=0 // pred_fallthru
    _
  // Predicated region
  $region38: #{tpu_custom_call.1} parent=0 // pred_check
    _
  $region39: #{tpu_custom_call.1} parent=0 // pred_check_branch
    %221 = sbr.rel (0) target = $region41
  $region40: #{tpu_custom_call.1} parent=0 // pred_region
    _
  $region41: #{tpu_custom_call.1} parent=0 // pred_fallthru
    _

</llo_original>
